<compile_context>
chip_gen: v5e
topology: v5e:2x2
jax: 0.10.0
libtpu: 0.0.40
codegen_flags: <defaults>
</compile_context>

<pallas_src>
import functools

import jax
import jax.numpy as jnp
from jax import lax
from jax.experimental import pallas as pl
from jax.experimental.pallas import tpu as pltpu

_LANE = 128


def _stack_ln_kernel(x_ref, g_ref, b_ref, o_ref, *, c, eps):
    # x_ref: (1, 2C, T) with T = lane tile (multiple of 128); g_ref/b_ref: (1, 2C, 1).
    x = x_ref[...].astype(jnp.float32)

    def _norm(xc):
        # LayerNorm over the channel (sublane) axis; biased variance like torch.
        mean = jnp.mean(xc, axis=1, keepdims=True)
        centered = xc - mean
        var = jnp.mean(centered * centered, axis=1, keepdims=True)
        return centered * lax.rsqrt(var + eps)

    y = jnp.concatenate([_norm(x[:, :c, :]), _norm(x[:, c:, :])], axis=1)
    y = y * g_ref[...].astype(jnp.float32) + b_ref[...].astype(jnp.float32)
    o_ref[...] = y.astype(o_ref.dtype)


def _pick_tile(hw, c2, itemsize, vmem_budget_bytes=2 << 20):
    """Largest 128-multiple lane tile with one (2C, tile) block under ~2 MiB.

    With double-buffered input + output blocks this stays far below even v7x's
    32 MiB default scoped VMEM limit while keeping per-grid-step overhead amortized.
    """
    max_lanes = max(_LANE, (vmem_budget_bytes // (c2 * itemsize)) // _LANE * _LANE)
    hw_up = -(-hw // _LANE) * _LANE
    return min(hw_up, max_lanes)


def stack_layer_norm(x, gamma_v, beta_v, gamma_h, beta_h, eps=1e-5):
    """x: (B, 2*n_filters, H, W) NCHW. Returns same shape/dtype."""
    B, C2, H, W = x.shape
    C = C2 // 2
    HW = H * W

    x3 = x.reshape(B, C2, HW)
    itemsize = jnp.dtype(x.dtype).itemsize
    tile = _pick_tile(HW, C2, itemsize)
    HWp = -(-HW // tile) * tile
    if HWp != HW:
        # Pad lanes only; channel stats are per-pixel so padded columns are junk we slice off.
        x3 = jnp.pad(x3, ((0, 0), (0, 0), (0, HWp - HW)))
    nt = HWp // tile

    # Fuse both halves' affine params into one tiny broadcast operand.
    g = jnp.concatenate([gamma_v, gamma_h]).reshape(1, C2, 1).astype(jnp.float32)
    b = jnp.concatenate([beta_v, beta_h]).reshape(1, C2, 1).astype(jnp.float32)

    out = pl.pallas_call(
        functools.partial(_stack_ln_kernel, c=C, eps=eps),
        out_shape=jax.ShapeDtypeStruct((B, C2, HWp), x.dtype),
        grid_spec=pltpu.PrefetchScalarGridSpec(
            num_scalar_prefetch=0,
            grid=(nt, B),  # large HW-tile axis leading; everything parallel
            in_specs=[
                pl.BlockSpec((1, C2, tile), lambda j, i: (i, 0, j)),
                pl.BlockSpec((1, C2, 1), lambda j, i: (0, 0, 0)),
                pl.BlockSpec((1, C2, 1), lambda j, i: (0, 0, 0)),
            ],
            out_specs=pl.BlockSpec((1, C2, tile), lambda j, i: (i, 0, j)),
        ),
        compiler_params=pltpu.CompilerParams(
            dimension_semantics=("parallel", "parallel")),
    )(x3, g, b)

    if HWp != HW:
        out = out[:, :, :HW]
    return out.reshape(B, C2, H, W)


def _reference(x, gamma_v, beta_v, gamma_h, beta_h, eps=1e-5):
    B, C2, H, W = x.shape
    C = C2 // 2

    def ln(xc, g, b):
        xn = jnp.transpose(xc, (0, 2, 3, 1)).astype(jnp.float32)
        mean = jnp.mean(xn, axis=-1, keepdims=True)
        var = jnp.mean((xn - mean) ** 2, axis=-1, keepdims=True)
        y = (xn - mean) / jnp.sqrt(var + eps) * g + b
        return jnp.transpose(y.astype(xc.dtype), (0, 3, 1, 2))

    return jnp.concatenate([ln(x[:, :C], gamma_v, beta_v),
                            ln(x[:, C:], gamma_h, beta_h)], axis=1)


if __name__ == "__main__":
    key = jax.random.PRNGKey(0)
    n_filters = 4
    B, H, W = 2, 16, 16

    kx, kgv, kbv, kgh, kbh = jax.random.split(key, 5)
    x = jax.random.normal(kx, (B, 2 * n_filters, H, W), dtype=jnp.float32)
    # nn.LayerNorm default init is weight=1, bias=0; perturb deterministically so the
    # affine path is exercised.
    gamma_v = 1.0 + 0.1 * jax.random.normal(kgv, (n_filters,), dtype=jnp.float32)
    beta_v = 0.1 * jax.random.normal(kbv, (n_filters,), dtype=jnp.float32)
    gamma_h = 1.0 + 0.1 * jax.random.normal(kgh, (n_filters,), dtype=jnp.float32)
    beta_h = 0.1 * jax.random.normal(kbh, (n_filters,), dtype=jnp.float32)

    out = stack_layer_norm(x, gamma_v, beta_v, gamma_h, beta_h)
    out = jax.block_until_ready(out)

    ref = _reference(x, gamma_v, beta_v, gamma_h, beta_h)
    assert out.shape == x.shape and out.dtype == x.dtype
    assert jnp.allclose(out, ref, atol=1e-5, rtol=1e-5)
    print("KERNEL_OK")
</pallas_src>

<mosaic_0001>
module attributes {stable_mosaic.version = 11 : i64} {
  func.func @_stack_ln_kernel(%arg0: i32, %arg1: i32, %arg2: memref<1x8x256xf32, #tpu.memory_space<vmem>>, %arg3: memref<1x8x1xf32, #tpu.memory_space<vmem>>, %arg4: memref<1x8x1xf32, #tpu.memory_space<vmem>>, %arg5: memref<1x8x256xf32, #tpu.memory_space<vmem>>) attributes {dimension_semantics = [#tpu.dimension_semantics<parallel>, #tpu.dimension_semantics<parallel>], iteration_bounds = array<i64: 1, 2>, scalar_prefetch = 0 : i64, scratch_operands = 0 : i64, tpu.core_type = #tpu.core_type<tc>, window_params = [{transform_indices = @transform_0, window_bounds = array<i64: 1, 8, 256>}, {pipeline_mode = #tpu.pipeline_mode<synchronous>, transform_indices = @transform_1, window_bounds = array<i64: 1, 8, 1>}, {pipeline_mode = #tpu.pipeline_mode<synchronous>, transform_indices = @transform_2, window_bounds = array<i64: 1, 8, 1>}, {transform_indices = @transform_3, window_bounds = array<i64: 1, 8, 256>}]} {
    %c0 = arith.constant 0 : index
    %c0_0 = arith.constant 0 : index
    %c0_1 = arith.constant 0 : index
    %0 = vector.load %arg2[%c0, %c0_0, %c0_1] : memref<1x8x256xf32, #tpu.memory_space<vmem>>, vector<1x8x256xf32>
    %1 = vector.extract_strided_slice %0 {offsets = [0, 0, 0], sizes = [1, 4, 256], strides = [1, 1, 1]} : vector<1x8x256xf32> to vector<1x4x256xf32>
    %cst = arith.constant dense<0.000000e+00> : vector<1x256xf32>
    %2 = vector.multi_reduction <add>, %1, %cst [1] : vector<1x4x256xf32> to vector<1x256xf32>
    %3 = vector.shape_cast %2 : vector<1x256xf32> to vector<1x1x256xf32>
    %cst_2 = arith.constant 4.000000e+00 : f32
    %4 = vector.broadcast %cst_2 : f32 to vector<1x1x256xf32>
    %5 = arith.divf %3, %4 : vector<1x1x256xf32>
    %6 = vector.broadcast %5 : vector<1x1x256xf32> to vector<1x4x256xf32>
    %7 = arith.subf %1, %6 : vector<1x4x256xf32>
    %8 = arith.mulf %7, %7 : vector<1x4x256xf32>
    %cst_3 = arith.constant dense<0.000000e+00> : vector<1x256xf32>
    %9 = vector.multi_reduction <add>, %8, %cst_3 [1] : vector<1x4x256xf32> to vector<1x256xf32>
    %10 = vector.shape_cast %9 : vector<1x256xf32> to vector<1x1x256xf32>
    %cst_4 = arith.constant 4.000000e+00 : f32
    %11 = vector.broadcast %cst_4 : f32 to vector<1x1x256xf32>
    %12 = arith.divf %10, %11 : vector<1x1x256xf32>
    %cst_5 = arith.constant 9.99999974E-6 : f32
    %13 = vector.broadcast %cst_5 : f32 to vector<1x1x256xf32>
    %14 = arith.addf %12, %13 : vector<1x1x256xf32>
    %15 = math.rsqrt %14 : vector<1x1x256xf32>
    %16 = vector.broadcast %15 : vector<1x1x256xf32> to vector<1x4x256xf32>
    %17 = arith.mulf %7, %16 : vector<1x4x256xf32>
    %18 = vector.extract_strided_slice %0 {offsets = [0, 4, 0], sizes = [1, 4, 256], strides = [1, 1, 1]} : vector<1x8x256xf32> to vector<1x4x256xf32>
    %cst_6 = arith.constant dense<0.000000e+00> : vector<1x256xf32>
    %19 = vector.multi_reduction <add>, %18, %cst_6 [1] : vector<1x4x256xf32> to vector<1x256xf32>
    %20 = vector.shape_cast %19 : vector<1x256xf32> to vector<1x1x256xf32>
    %cst_7 = arith.constant 4.000000e+00 : f32
    %21 = vector.broadcast %cst_7 : f32 to vector<1x1x256xf32>
    %22 = arith.divf %20, %21 : vector<1x1x256xf32>
    %23 = vector.broadcast %22 : vector<1x1x256xf32> to vector<1x4x256xf32>
    %24 = arith.subf %18, %23 : vector<1x4x256xf32>
    %25 = arith.mulf %24, %24 : vector<1x4x256xf32>
    %cst_8 = arith.constant dense<0.000000e+00> : vector<1x256xf32>
    %26 = vector.multi_reduction <add>, %25, %cst_8 [1] : vector<1x4x256xf32> to vector<1x256xf32>
    %27 = vector.shape_cast %26 : vector<1x256xf32> to vector<1x1x256xf32>
    %cst_9 = arith.constant 4.000000e+00 : f32
    %28 = vector.broadcast %cst_9 : f32 to vector<1x1x256xf32>
    %29 = arith.divf %27, %28 : vector<1x1x256xf32>
    %cst_10 = arith.constant 9.99999974E-6 : f32
    %30 = vector.broadcast %cst_10 : f32 to vector<1x1x256xf32>
    %31 = arith.addf %29, %30 : vector<1x1x256xf32>
    %32 = math.rsqrt %31 : vector<1x1x256xf32>
    %33 = vector.broadcast %32 : vector<1x1x256xf32> to vector<1x4x256xf32>
    %34 = arith.mulf %24, %33 : vector<1x4x256xf32>
    %35 = tpu.concatenate %17, %34 in 1 : vector<1x4x256xf32>, vector<1x4x256xf32> -> vector<1x8x256xf32>
    %c0_11 = arith.constant 0 : index
    %c0_12 = arith.constant 0 : index
    %c0_13 = arith.constant 0 : index
    %36 = vector.load %arg3[%c0_11, %c0_12, %c0_13] : memref<1x8x1xf32, #tpu.memory_space<vmem>>, vector<1x8x1xf32>
    %37 = vector.broadcast %36 : vector<1x8x1xf32> to vector<1x8x256xf32>
    %38 = arith.mulf %35, %37 : vector<1x8x256xf32>
    %c0_14 = arith.constant 0 : index
    %c0_15 = arith.constant 0 : index
    %c0_16 = arith.constant 0 : index
    %39 = vector.load %arg4[%c0_14, %c0_15, %c0_16] : memref<1x8x1xf32, #tpu.memory_space<vmem>>, vector<1x8x1xf32>
    %40 = vector.broadcast %39 : vector<1x8x1xf32> to vector<1x8x256xf32>
    %41 = arith.addf %38, %40 : vector<1x8x256xf32>
    %c0_17 = arith.constant 0 : index
    %c0_18 = arith.constant 0 : index
    %c0_19 = arith.constant 0 : index
    %42 = vector.load %arg5[%c0_17, %c0_18, %c0_19] : memref<1x8x256xf32, #tpu.memory_space<vmem>>, vector<1x8x256xf32>
    tpu.vector_store %arg5[%c0_17, %c0_18, %c0_19], %41 {strides = array<i32>} : memref<1x8x256xf32, #tpu.memory_space<vmem>>, vector<1x8x256xf32>,
    return
  }
  func.func @transform_0(%arg0: i32, %arg1: i32) -> (i32, i32, i32) {
    %c0_i32 = arith.constant 0 : i32
    %c0_i32_0 = arith.constant 0 : i32
    return %arg1, %c0_i32, %arg0 : i32, i32, i32
  }
  func.func @transform_1(%arg0: i32, %arg1: i32) -> (i32, i32, i32) {
    %c0_i32 = arith.constant 0 : i32
    %c0_i32_0 = arith.constant 0 : i32
    %c0_i32_1 = arith.constant 0 : i32
    %c0_i32_2 = arith.constant 0 : i32
    return %c0_i32, %c0_i32_0, %c0_i32_1 : i32, i32, i32
  }
  func.func @transform_2(%arg0: i32, %arg1: i32) -> (i32, i32, i32) {
    %c0_i32 = arith.constant 0 : i32
    %c0_i32_0 = arith.constant 0 : i32
    %c0_i32_1 = arith.constant 0 : i32
    %c0_i32_2 = arith.constant 0 : i32
    return %c0_i32, %c0_i32_0, %c0_i32_1 : i32, i32, i32
  }
  func.func @transform_3(%arg0: i32, %arg1: i32) -> (i32, i32, i32) {
    %c0_i32 = arith.constant 0 : i32
    %c0_i32_0 = arith.constant 0 : i32
    return %arg1, %c0_i32, %arg0 : i32, i32, i32
  }
}

</mosaic_0001>

<llo_original>
// kernel: tpu_custom_call.1
$region0: #{tpu_custom_call.1}
  #allocation0 [shape = 'u32[]', space=smem, size = 0x4, offset = 0x4, fixed_abs, tag = 'smem constant byte address 0x4 - core index']
  #allocation1 [shape = 'u32[72,128]{1,0:T(1,128)}', space=vmem, size = 0x9000, scoped, tag = 'internal scratch']
  %s0 = inlined_call_operand.hbm [shape: f32[2,8,256], index: 0, kind: input, shape index: {}]
  %s1 = inlined_call_operand.vmem [shape: f32[1,8,1], index: 1, kind: input, shape index: {}]
  %s2 = inlined_call_operand.vmem [shape: f32[1,8,1], index: 2, kind: input, shape index: {}]
  %s3 = inlined_call_operand.hbm [shape: f32[2,8,256], index: 3, kind: output, shape index: {}]
  %s4 = sld [smem:[#allocation0]]
  $region49: #{tpu_custom_call.1} parent=0
    _
  %s6 = ssub.s32 1, %s4
  %s7 = scalar_select 0, %s6, %s4
  $region1: #{tpu_custom_call.1} parent=0
    #allocation2 [shape = 'u8[16384]{0}', space=vmem, size = 0x4000, scoped, tag = 'input window, operand 0']
    #allocation3 [shape = 's32[2]{0}', space=sflag, size = 0x8, scoped, tag = 'scoped memory for tpu_custom_call.1']
    #allocation4 [shape = 's32[2]{0}', space=sflag, size = 0x8, scoped, tag = 'scoped memory for tpu_custom_call.1']
    #allocation5 [shape = 'u8[16384]{0}', space=vmem, size = 0x4000, scoped, tag = 'output window, operand 0']
    %8 = vsyncpa [#allocation3], 0
    %s9 = scalar_lea.sflag [#allocation3], 1
    %10 = vsyncpa %s9, 0
    %11 = vsyncpa [#allocation4], 0
    %s12 = scalar_lea.sflag [#allocation4], 1
    %13 = vsyncpa %s12, 0
    loop: start=0, step=1, limit=4
    $region2: #{tpu_custom_call.1} parent=1 // loop_pre_header
      _
    $region3: #{tpu_custom_call.1} parent=1 // loop_header
      %s15 = sphi 0, %s19
      %p16 = scmp.ge.s32.totalorder %s15, 4
      %s22 = sphi 0, %s34
      %s23 = sphi 0, %s30
      %s24 = sphi 0, %s22
      %s25 = sphi 0, %s23
      %s26 = sphi 0, %s24
      %s27 = sphi 0, %s25
      %s39 = sphi 0, %s41
      %s42 = sphi 0, %s39
      %s43 = sphi 0, %s42
      %s59 = sphi 0, %s43
      %s63 = sphi 0, %s63
      %s65 = sphi 0, %s63
      %s66 = sphi 0, %s65
      %s80 = sphi 0, %s66
      %s84 = sphi 0, %s84
      %s86 = sphi 0, %s84
      %s87 = sphi 0, %s86
      %s101 = sphi 0, %s87
      %s109 = sphi 0, %s111
      %s112 = sphi 0, %s109
      %s113 = sphi 0, %s112
      %s129 = sphi 0, %s113
    $region4: #{tpu_custom_call.1} parent=1 // loop_header_branch
      %18 = sbr.rel (%p16) target = $region8
    $region5: #{tpu_custom_call.1} parent=1 // loop_body
      %s20 = ssub.s32 %s15, 1
      %s21 = ssub.s32 %s15, 2
      %s28 = sadd.s32 1, %s23
      %p29 = scmp.ge.s32.totalorder %s28, 2
      %s30 = scalar_select %p29, 0, %s28
      %s31 = sadd.s32 1, %s22
      %s32 = scalar_select %p29, %s31, %s22
      %p33 = scmp.ge.s32.totalorder %s32, 1
      %s34 = scalar_select %p33, 0, %s32
      %s35 = ssub.s32 %s23, %s30
      %s36 = ssub.s32 %s22, %s34
      %s37 = sor.u32 %s35, %s36
      %p38 = scmp.eq.s32.totalorder %s37, 0
      %s40 = sadd.s32 %s39, 1
      %s41 = scalar_select %p38, %s39, %s40
      %p44 = pneg %p38
      %p45 = scmp.eq.s32.totalorder %s15, 1
      %p46 = por %p44, %p45
      %p47 = scmp.ne.s32.totalorder %s39, %s42
      %p48 = scmp.eq.s32.totalorder %s15, 0
      %p49 = por %p47, %p48
      %p50 = scmp.ne.s32.totalorder %s39, %s42
      %p51 = scmp.eq.s32.totalorder %s20, 1
      %p52 = por %p50, %p51
      %p53 = scmp.ne.s32.totalorder %s42, %s43
      %p54 = scmp.eq.s32.totalorder %s20, 0
      %p55 = por %p53, %p54
      %p56 = scmp.ne.s32.totalorder %s42, %s43
      %p57 = scmp.eq.s32.totalorder %s21, 1
      %p58 = por %p56, %p57
      %p60 = scmp.ne.s32.totalorder %s43, %s59
      %p61 = scmp.eq.s32.totalorder %s21, 0
      %p62 = por %p60, %p61
      %s64 = sadd.s32 %s63, 1
      %p67 = scmp.eq.s32.totalorder %s15, 1
      %p68 = scmp.ne.s32.totalorder %s63, %s65
      %p69 = scmp.eq.s32.totalorder %s15, 0
      %p70 = por %p68, %p69
      %p71 = scmp.ne.s32.totalorder %s63, %s65
      %p72 = scmp.eq.s32.totalorder %s20, 1
      %p73 = por %p71, %p72
      %p74 = scmp.ne.s32.totalorder %s65, %s66
      %p75 = scmp.eq.s32.totalorder %s20, 0
      %p76 = por %p74, %p75
      %p77 = scmp.ne.s32.totalorder %s65, %s66
      %p78 = scmp.eq.s32.totalorder %s21, 1
      %p79 = por %p77, %p78
      %p81 = scmp.ne.s32.totalorder %s66, %s80
      %p82 = scmp.eq.s32.totalorder %s21, 0
      %p83 = por %p81, %p82
      %s85 = sadd.s32 %s84, 1
      %p88 = scmp.eq.s32.totalorder %s15, 1
      %p89 = scmp.ne.s32.totalorder %s84, %s86
      %p90 = scmp.eq.s32.totalorder %s15, 0
      %p91 = por %p89, %p90
      %p92 = scmp.ne.s32.totalorder %s84, %s86
      %p93 = scmp.eq.s32.totalorder %s20, 1
      %p94 = por %p92, %p93
      %p95 = scmp.ne.s32.totalorder %s86, %s87
      %p96 = scmp.eq.s32.totalorder %s20, 0
      %p97 = por %p95, %p96
      %p98 = scmp.ne.s32.totalorder %s86, %s87
      %p99 = scmp.eq.s32.totalorder %s21, 1
      %p100 = por %p98, %p99
      %p102 = scmp.ne.s32.totalorder %s87, %s101
      %p103 = scmp.eq.s32.totalorder %s21, 0
      %p104 = por %p102, %p103
      %s105 = ssub.s32 %s23, %s30
      %s106 = ssub.s32 %s22, %s34
      %s107 = sor.u32 %s105, %s106
      %p108 = scmp.eq.s32.totalorder %s107, 0
      %s110 = sadd.s32 %s109, 1
      %s111 = scalar_select %p108, %s109, %s110
      %p114 = pneg %p108
      %p115 = scmp.eq.s32.totalorder %s15, 1
      %p116 = por %p114, %p115
      %p117 = scmp.ne.s32.totalorder %s109, %s112
      %p118 = scmp.eq.s32.totalorder %s15, 0
      %p119 = por %p117, %p118
      %p120 = scmp.ne.s32.totalorder %s109, %s112
      %p121 = scmp.eq.s32.totalorder %s20, 1
      %p122 = por %p120, %p121
      %p123 = scmp.ne.s32.totalorder %s112, %s113
      %p124 = scmp.eq.s32.totalorder %s20, 0
      %p125 = por %p123, %p124
      %p126 = scmp.ne.s32.totalorder %s112, %s113
      %p127 = scmp.eq.s32.totalorder %s21, 1
      %p128 = por %p126, %p127
      %p130 = scmp.ne.s32.totalorder %s113, %s129
      %p131 = scmp.eq.s32.totalorder %s21, 0
      %p132 = por %p130, %p131
      %p133 = scmp.le.s32.totalorder 1, %s15
      %p134 = scmp.lt.s32.totalorder %s15, 3
      %p135 = pnand %p133, %p134
      %p136 = pneg %p135
      // Predicated region
      $region9: #{tpu_custom_call.1} parent=5 // pred_check
        _
      $region10: #{tpu_custom_call.1} parent=5 // pred_check_branch
        %138 = sbr.rel (%p135) target = $region12
      $region11: #{tpu_custom_call.1} parent=5 // pred_region
        %s139 = ssub.s32 %s15, 1
        // Predicated region
        $region13: #{tpu_custom_call.1} parent=11 // pred_check
          %p140 = pneg %p76
        $region14: #{tpu_custom_call.1} parent=11 // pred_check_branch
          %142 = sbr.rel (%p140) target = $region16
        $region15: #{tpu_custom_call.1} parent=11 // pred_region
          _
        $region16: #{tpu_custom_call.1} parent=11 // pred_fallthru
          _
        // Predicated region
        $region17: #{tpu_custom_call.1} parent=11 // pred_check
          %p143 = pneg %p97
        $region18: #{tpu_custom_call.1} parent=11 // pred_check_branch
          %145 = sbr.rel (%p143) target = $region20
        $region19: #{tpu_custom_call.1} parent=11 // pred_region
          _
        $region20: #{tpu_custom_call.1} parent=11 // pred_fallthru
          _
      $region12: #{tpu_custom_call.1} parent=5 // pred_fallthru
        _
      %p146 = scmp.lt.s32.totalorder %s15, 2
      // Predicated region
      $region21: #{tpu_custom_call.1} parent=5 // pred_check
        %p147 = pneg %p146
      $region22: #{tpu_custom_call.1} parent=5 // pred_check_branch
        %149 = sbr.rel (%p147) target = $region24
      $region23: #{tpu_custom_call.1} parent=5 // pred_region
        // Predicated region
        $region25: #{tpu_custom_call.1} parent=23 // pred_check
          %p150 = pneg %p49
        $region26: #{tpu_custom_call.1} parent=23 // pred_check_branch
          %152 = sbr.rel (%p150) target = $region28
        $region27: #{tpu_custom_call.1} parent=23 // pred_region
          %s153 = sand.u32 %s39, 1
          %s154 = scalar_lea.sflag [#allocation3], %s153
          %s155 = sand.u32 %s39, 1
          %s156 = smul.addr %s155, 16
          %s157 = scalar_lea.vmem [#allocation2], %s156
          %s158 = smul.u32 2, %s22
          %160 = vsyncadd %s154, 0
          %s161 = smul.addr %s23, 2
          %s162 = sadd.s32 %s158, %s161
          %s163 = smul.addr %s162, 8
          %s164 = scalar_lea.hbm %s0, %s163
          %s166 = sshll.u32 %s164, 4
          %s167 = int_to_ptr.hbm [resolvable:$true] %s166
          %s168 = sshll.u32 %s157, 4
          %s169 = int_to_ptr.vmem [resolvable:$true] %s168
          %171 = dma.hbm_to_vmem [thread:$0]  %s167, 256, %s169, %s154
        $region28: #{tpu_custom_call.1} parent=23 // pred_fallthru
          _
      $region24: #{tpu_custom_call.1} parent=5 // pred_fallthru
        _
      %p172 = scmp.le.s32.totalorder 1, %s15
      %p173 = scmp.lt.s32.totalorder %s15, 3
      %p174 = pnand %p172, %p173
      %p175 = pneg %p174
      // Predicated region
      $region29: #{tpu_custom_call.1} parent=5 // pred_check
        _
      $region30: #{tpu_custom_call.1} parent=5 // pred_check_branch
        %177 = sbr.rel (%p174) target = $region32
      $region31: #{tpu_custom_call.1} parent=5 // pred_region
        %s178 = ssub.s32 %s15, 1
        %s179 = sand.u32 %s42, 1
        %s180 = scalar_lea.sflag [#allocation3], %s179
        %s181 = sand.u32 %s42, 1
        %s182 = smul.addr %s181, 16
        %s183 = scalar_lea.vmem [#allocation2], %s182
        // Predicated region
        $region33: #{tpu_custom_call.1} parent=31 // pred_check
          %p184 = pneg %p55
        $region34: #{tpu_custom_call.1} parent=31 // pred_check_branch
          %186 = sbr.rel (%p184) target = $region36
        $region35: #{tpu_custom_call.1} parent=31 // pred_region
          %188 = dma.done %s180, 256
        $region36: #{tpu_custom_call.1} parent=31 // pred_fallthru
          _
        %s189 = sand.u32 %s42, 1
        %s190 = scalar_lea.sflag [#allocation3], %s189
        %s191 = sand.u32 %s42, 1
        %s192 = smul.addr %s191, 16
        %s193 = scalar_lea.vmem [#allocation2], %s192
        %p194 = pneg %p55
        %p195 = pneg %p52
        %p196 = pneg %p76
        %p197 = pneg %p73
        %p198 = pneg %p97
        %p199 = pneg %p94
        %p200 = pneg %p125
        %p201 = pneg %p122
        %s202 = sand.u32 %s112, 1
        %s203 = scalar_lea.sflag [#allocation4], %s202
        %s204 = sand.u32 %s112, 1
        %s205 = smul.addr %s204, 16
        %s206 = scalar_lea.vmem [#allocation5], %s205
        %s207 = smul.u32 2, %s24
        %s208 = smul.u32 2, %s24
        %v209 = vld [vmem:[%s183] sm:$0xff]
        %v210 = vld [vmem:[%s183 + $0x8] sm:$0xff]
        %vm211 = vcmask 1043456
        %v212 = vsel %vm211, %v209, 0.0
        %v213 = vrot.slane %v212, 4
        %v214 = vadd.f32 %v212, %v213
        %v215 = vrot.slane %v214, 2
        %v216 = vadd.f32 %v214, %v215
        %v217 = vrot.slane %v216, 1
        %v218 = vadd.f32 %v216, %v217
        %v219 = vsel %vm211, %v210, 0.0
        %v220 = vrot.slane %v219, 4
        %v221 = vadd.f32 %v219, %v220
        %v222 = vrot.slane %v221, 2
        %v223 = vadd.f32 %v221, %v222
        %v224 = vrot.slane %v223, 1
        %v225 = vadd.f32 %v223, %v224
        %v226 = vrcp.pop 4.0
        %v227 = vmul.f32 4.0, %v226
        %v228 = vsub.f32 1.0, %v227
        %v229 = vmul.f32 %v226, %v228
        %v230 = vadd.f32 %v226, %v229
        %vm231 = vweird.f32 %v226
        %v232 = vsel %vm231, %v226, %v230
        %v233 = vmul.f32 %v218, %v232
        %v234 = vmul.f32 %v225, %v232
        %v235 = vsub.f32 %v209, %v233
        %v236 = vsub.f32 %v210, %v234
        %v237 = vmul.f32 %v235, %v235
        %v238 = vmul.f32 %v236, %v236
        %v239 = vsel %vm211, %v237, 0.0
        %v240 = vrot.slane %v239, 4
        %v241 = vadd.f32 %v239, %v240
        %v242 = vrot.slane %v241, 2
        %v243 = vadd.f32 %v241, %v242
        %v244 = vrot.slane %v243, 1
        %v245 = vadd.f32 %v243, %v244
        %v246 = vsel %vm211, %v238, 0.0
        %v247 = vrot.slane %v246, 4
        %v248 = vadd.f32 %v246, %v247
        %v249 = vrot.slane %v248, 2
        %v250 = vadd.f32 %v248, %v249
        %v251 = vrot.slane %v250, 1
        %v252 = vadd.f32 %v250, %v251
        %v253 = vmul.f32 %v245, %v232
        %v254 = vmul.f32 %v252, %v232
        %v255 = vadd.f32 %v253, 1e-05
        %v256 = vadd.f32 %v254, 1e-05
        %v257 = vrsqrt.pop %v255
        %v258 = vmul.f32 %v257, %v255
        %v259 = vmul.f32 %v258, %v257
        %v260 = vmul.f32 0.5, %v259
        %v261 = vsub.f32 1.5, %v260
        %v262 = vmul.f32 %v257, %v261
        %vm263 = vweird.f32 %v255
        %vm264 = vweird.f32 %v257
        %vm265 = vmor %vm263, %vm264
        %v266 = vsel %vm265, %v257, %v262
        %v267 = vrsqrt.pop %v256
        %v268 = vmul.f32 %v267, %v256
        %v269 = vmul.f32 %v268, %v267
        %v270 = vmul.f32 0.5, %v269
        %v271 = vsub.f32 1.5, %v270
        %v272 = vmul.f32 %v267, %v271
        %vm273 = vweird.f32 %v256
        %vm274 = vweird.f32 %v267
        %vm275 = vmor %vm273, %vm274
        %v276 = vsel %vm275, %v267, %v272
        %v277 = vmul.f32 %v235, %v266
        %v278 = vmul.f32 %v236, %v276
        %v281 = vrot.slane %v209, 4
        %v282 = vrot.slane %v210, 4
        %v285 = vsel %vm211, %v281, 0.0
        %v286 = vrot.slane %v285, 4
        %v287 = vadd.f32 %v285, %v286
        %v288 = vrot.slane %v287, 2
        %v289 = vadd.f32 %v287, %v288
        %v290 = vrot.slane %v289, 1
        %v291 = vadd.f32 %v289, %v290
        %v292 = vsel %vm211, %v282, 0.0
        %v293 = vrot.slane %v292, 4
        %v294 = vadd.f32 %v292, %v293
        %v295 = vrot.slane %v294, 2
        %v296 = vadd.f32 %v294, %v295
        %v297 = vrot.slane %v296, 1
        %v298 = vadd.f32 %v296, %v297
        %v299 = vmul.f32 %v291, %v232
        %v300 = vmul.f32 %v298, %v232
        %v301 = vsub.f32 %v209, %v299
        %v302 = vsub.f32 %v210, %v300
        %v303 = vmul.f32 %v301, %v301
        %v304 = vmul.f32 %v302, %v302
        %v307 = vrot.slane %v303, 4
        %v308 = vrot.slane %v304, 4
        %v311 = vsel %vm211, %v307, 0.0
        %v312 = vrot.slane %v311, 4
        %v313 = vadd.f32 %v311, %v312
        %v314 = vrot.slane %v313, 2
        %v315 = vadd.f32 %v313, %v314
        %v316 = vrot.slane %v315, 1
        %v317 = vadd.f32 %v315, %v316
        %v318 = vsel %vm211, %v308, 0.0
        %v319 = vrot.slane %v318, 4
        %v320 = vadd.f32 %v318, %v319
        %v321 = vrot.slane %v320, 2
        %v322 = vadd.f32 %v320, %v321
        %v323 = vrot.slane %v322, 1
        %v324 = vadd.f32 %v322, %v323
        %v325 = vmul.f32 %v317, %v232
        %v326 = vmul.f32 %v324, %v232
        %v327 = vadd.f32 %v325, 1e-05
        %v328 = vadd.f32 %v326, 1e-05
        %v329 = vrsqrt.pop %v327
        %v330 = vmul.f32 %v329, %v327
        %v331 = vmul.f32 %v330, %v329
        %v332 = vmul.f32 0.5, %v331
        %v333 = vsub.f32 1.5, %v332
        %v334 = vmul.f32 %v329, %v333
        %vm335 = vweird.f32 %v327
        %vm336 = vweird.f32 %v329
        %vm337 = vmor %vm335, %vm336
        %v338 = vsel %vm337, %v329, %v334
        %v339 = vrsqrt.pop %v328
        %v340 = vmul.f32 %v339, %v328
        %v341 = vmul.f32 %v340, %v339
        %v342 = vmul.f32 0.5, %v341
        %v343 = vsub.f32 1.5, %v342
        %v344 = vmul.f32 %v339, %v343
        %vm345 = vweird.f32 %v328
        %vm346 = vweird.f32 %v339
        %vm347 = vmor %vm345, %vm346
        %v348 = vsel %vm347, %v339, %v344
        %v349 = vmul.f32 %v301, %v338
        %v350 = vmul.f32 %v302, %v348
        %v351 = vsel %vm211, %v277, %v349
        %v352 = vsel %vm211, %v278, %v350
        %v353 = vld [vmem:[%s1] sm:$0xff]
        %355 = vset.pattern.permute.xlu0 0
        %356 = vperm.xlu0 %355, %v353
        %v357 = vpop.permute.xlu0 %356
        %v359 = vmul.f32 %v351, %v357
        %v360 = vmul.f32 %v352, %v357
        %v361 = vld [vmem:[%s2] sm:$0xff]
        %363 = vset.pattern.permute.xlu0 0
        %364 = vperm.xlu0 %363, %v361
        %v365 = vpop.permute.xlu0 %364
        %v367 = vadd.f32 %v359, %v365
        %v368 = vadd.f32 %v360, %v365
        %369 = vst [vmem:[%s206] sm:$0xff] %v367
        %370 = vst [vmem:[%s206 + $0x8] sm:$0xff] %v368
        %s371 = sand.u32 %s112, 1
        %s372 = scalar_lea.sflag [#allocation4], %s371
        %s373 = sand.u32 %s112, 1
        %s374 = smul.addr %s373, 16
        %s375 = scalar_lea.vmem [#allocation5], %s374
        // Predicated region
        $region37: #{tpu_custom_call.1} parent=31 // pred_check
          %p376 = pneg %p122
        $region38: #{tpu_custom_call.1} parent=31 // pred_check_branch
          %378 = sbr.rel (%p376) target = $region40
        $region39: #{tpu_custom_call.1} parent=31 // pred_region
          %s379 = smul.u32 2, %s24
          %381 = vsyncadd %s372, 0
          %s382 = smul.addr %s25, 2
          %s383 = sadd.s32 %s379, %s382
          %s384 = smul.addr %s383, 8
          %s385 = scalar_lea.hbm %s3, %s384
          %s387 = sshll.u32 %s375, 4
          %s388 = int_to_ptr.vmem [resolvable:$true] %s387
          %s389 = sshll.u32 %s385, 4
          %s390 = int_to_ptr.hbm [resolvable:$true] %s389
          %392 = dma.vmem_to_hbm [thread:$0]  %s388, 256, %s390, %s372
        $region40: #{tpu_custom_call.1} parent=31 // pred_fallthru
          _
      $region32: #{tpu_custom_call.1} parent=5 // pred_fallthru
        _
      %p393 = scmp.le.s32.totalorder 2, %s15
      // Predicated region
      $region41: #{tpu_custom_call.1} parent=5 // pred_check
        %p394 = pneg %p393
      $region42: #{tpu_custom_call.1} parent=5 // pred_check_branch
        %396 = sbr.rel (%p394) target = $region44
      $region43: #{tpu_custom_call.1} parent=5 // pred_region
        %s397 = ssub.s32 %s15, 2
        // Predicated region
        $region45: #{tpu_custom_call.1} parent=43 // pred_check
          %p398 = pneg %p128
        $region46: #{tpu_custom_call.1} parent=43 // pred_check_branch
          %400 = sbr.rel (%p398) target = $region48
        $region47: #{tpu_custom_call.1} parent=43 // pred_region
          %s401 = sand.u32 %s113, 1
          %s402 = scalar_lea.sflag [#allocation4], %s401
          %s403 = sand.u32 %s113, 1
          %s404 = smul.addr %s403, 16
          %s405 = scalar_lea.vmem [#allocation5], %s404
          %407 = dma.done %s402, 256
        $region48: #{tpu_custom_call.1} parent=43 // pred_fallthru
          _
      $region44: #{tpu_custom_call.1} parent=5 // pred_fallthru
        _
    $region6: #{tpu_custom_call.1} parent=1 // loop_footer
      %s19 = sadd.s32 1, %s15
    $region7: #{tpu_custom_call.1} parent=1 // loop_footer_branch
      %14 = sbr.rel target = $region3
    $region8: #{tpu_custom_call.1} parent=1 // loop_exit
      _
    %408 = vsyncpa [#allocation3], 1
    %s409 = scalar_lea.sflag [#allocation3], 1
    %410 = vsyncpa %s409, 1
    %411 = vsyncpa [#allocation4], 1
    %s412 = scalar_lea.sflag [#allocation4], 1
    %413 = vsyncpa %s412, 1

</llo_original>
